<compile_context>
chip_gen: v6e
topology: v6e:2x2x1
jax: 0.10.0
libtpu: 0.0.40
codegen_flags: <defaults>
</compile_context>

<pallas_src>
import functools

import jax
import jax.numpy as jnp
from jax.experimental import pallas as pl
from jax.experimental.pallas import tpu as pltpu

LANES = 128
SUBLANES = 8


def _qfocal_elem(x, t, gamma, alpha, approx_recip):
    """Elementwise QFocal loss, f32 in / f32 out.

    BCEWithLogitsLoss(reduction='none'): max(x,0) - x*t + log1p(exp(-|x|))
    sigmoid(x) reuses e = exp(-|x|):  x>=0 -> 1/(1+e),  x<0 -> e/(1+e)
    """
    e = jnp.exp(-jnp.abs(x))                                   # EUP: exp (shared)
    bce = jnp.maximum(x, 0.0) - x * t + jnp.log1p(e)           # EUP: log1p
    num = jnp.where(x >= 0.0, 1.0, e)
    denom = 1.0 + e
    if approx_recip:
        pred_prob = num * pl.reciprocal(denom, approx=True)    # EUP: vrcp, no Newton
    else:
        pred_prob = num / denom                                # exact f32 divide
    # t*alpha + (1-t)*(1-alpha) == t*(2*alpha-1) + (1-alpha): 2 VALU ops, not 4.
    alpha_factor = t * (2.0 * alpha - 1.0) + (1.0 - alpha)
    a = jnp.abs(t - pred_prob)
    if gamma == 1.5:
        mod = a * jnp.sqrt(a)                                  # EUP: sqrt (no pow)
    elif gamma == 2.0:
        mod = a * a
    elif gamma == 1.0:
        mod = a
    elif gamma == 0.0:
        mod = jnp.ones_like(a)
    else:
        mod = a ** gamma                                       # general fallback
    return bce * alpha_factor * mod


def _fold_rows(v):
    """(R,128) f32 -> (8,128): sum the 8-row groups with a log-depth VPU add tree.

    Each operand is one aligned (8,128) f32 tile (one vreg), so the static
    slices are free and the dependent-add chain is O(log R), not O(R).
    """
    parts = [v[k:k + SUBLANES, :] for k in range(0, v.shape[0], SUBLANES)]
    while len(parts) > 1:
        nxt = [parts[i] + parts[i + 1] for i in range(0, len(parts) - 1, 2)]
        if len(parts) % 2:
            nxt.append(parts[-1])
        parts = nxt
    return parts[0]


def _qfocal_reduce_kernel(pred_ref, true_ref, out_ref, *, gamma, alpha,
                          approx_recip, rows, last_row_valid, row_tile,
                          tiles_per_split, full_tiles, needs_mask):
    j = pl.program_id(1)

    @pl.when(j == 0)
    def _():
        out_ref[...] = jnp.zeros_like(out_ref)

    x = pred_ref[...].astype(jnp.float32)
    t = true_ref[...].astype(jnp.float32)
    loss = _qfocal_elem(x, t, gamma, alpha, approx_recip)

    if needs_mask:
        i = pl.program_id(0)
        tile_id = i * tiles_per_split + j        # intended (unclamped) tile id

        if full_tiles > 0:
            @pl.when(tile_id < full_tiles)       # tile entirely valid: no mask work
            def _():
                out_ref[0] += _fold_rows(loss)

        @pl.when(tile_id >= full_tiles)          # last / duplicate tiles: mask
        def _():
            tm, tl = loss.shape
            row_g = tile_id * row_tile + jax.lax.broadcasted_iota(
                jnp.int32, (tm, tl), 0)
            col = jax.lax.broadcasted_iota(jnp.int32, (tm, tl), 1)
            # Valid: all rows before the last valid row, plus the first
            # `last_row_valid` lanes of the last row.  Keep it a select so
            # Pallas block-padding garbage (NaN/Inf) never propagates.
            valid = (row_g < rows - 1) | ((row_g == rows - 1) &
                                          (col < last_row_valid))
            out_ref[0] += _fold_rows(jnp.where(valid, loss, 0.0))
    else:
        out_ref[0] += _fold_rows(loss)


def _qfocal_none_kernel(pred_ref, true_ref, out_ref, *, gamma, alpha,
                        approx_recip):
    x = pred_ref[...].astype(jnp.float32)
    t = true_ref[...].astype(jnp.float32)
    out_ref[...] = _qfocal_elem(x, t, gamma, alpha,
                                approx_recip).astype(out_ref.dtype)


def _core_split():
    """(num_splits, use_core_parallel) for the current TPU generation."""
    try:
        kind = jax.devices()[0].device_kind.lower()
    except Exception:
        return 1, False
    if "v7" in kind:                      # 2 TCs/chip: needs CORE_PARALLEL
        return 2, True
    if ("v4" in kind) or ("v5p" in kind) or ("v5 p" in kind):
        return 2, False                   # megacore: plain "parallel" shards cores
    return 1, False                       # single-TC parts: splitting is overhead


def _vmem_limit_bytes(row_tile, per_row_io_bytes):
    """Scoped-VMEM budget: double-buffered I/O + f32 elementwise temporaries."""
    blk_f32 = row_tile * LANES * 4
    est = 2 * row_tile * per_row_io_bytes + 16 * blk_f32 + (2 << 20)
    # >= 32 MiB so small shapes never under-budget Mosaic scratch, <= 48 MiB so
    # the budget fits v7x's 64 MiB physical VMEM per TensorCore.
    return int(min(max(est, 32 << 20), 48 << 20))


def qfocal_loss(pred, true, *, gamma=1.5, alpha=0.25, reduction="mean",
                row_tile=4096, num_splits=None, approx_recip=True,
                out_dtype=None):
    """QFocalLoss(BCEWithLogitsLoss) forward. pred/true: any equal shape (NCHW etc.)."""
    assert pred.shape == true.shape
    orig_shape = pred.shape
    n_valid = int(pred.size)
    assert n_valid > 0

    # Lane-dense 2-D view (slab_rows, 128).  Reshape of a contiguous array is
    # free; a padding copy is only materialized when numel is not lane-aligned
    # (or smaller than one minimum tile).
    # TODO(synk): for lane-unaligned sizes the jnp.pad is still one extra
    # read+write of both inputs; a zero-copy path would need manual DMA of the
    # original (non-reshapable) array.
    rows = pl.cdiv(n_valid, LANES)

    if reduction in ("mean", "sum"):
        min_itemsize = min(pred.dtype.itemsize, true.dtype.itemsize)
    else:
        out_dtype = jnp.dtype(pred.dtype if out_dtype is None else out_dtype)
        min_itemsize = min(pred.dtype.itemsize, true.dtype.itemsize,
                           out_dtype.itemsize)
    # 8 rows per tile for 4-byte streams, 16 for 2-byte, 32 for 1-byte.
    row_align = max(SUBLANES, 32 // max(1, min_itemsize))

    slab_rows = max(rows, row_align)
    pad = slab_rows * LANES - n_valid
    p_flat = pred.reshape(-1)
    t_flat = true.reshape(-1)
    if pad:
        p_flat = jnp.pad(p_flat, (0, pad))
        t_flat = jnp.pad(t_flat, (0, pad))
    p2 = p_flat.reshape(slab_rows, LANES)
    t2 = t_flat.reshape(slab_rows, LANES)
    in_itemsize = p2.dtype.itemsize + t2.dtype.itemsize

    # Large row tile (memory-bound elementwise op), aligned, never larger than
    # the slab so the block shape always fits inside the array dims.
    row_tile = max(row_align, min(int(row_tile), 4096))
    row_tile = min(row_tile, (slab_rows // row_align) * row_align)
    row_tile = max(row_align, (row_tile // row_align) * row_align)
    n_tiles = pl.cdiv(slab_rows, row_tile)
    tile_elems = row_tile * LANES

    # Leading split axis: one slice of tiles per TensorCore.
    det_splits, det_core_parallel = _core_split()
    n_split = det_splits if num_splits is None else max(1, int(num_splits))
    n_split = min(n_split, n_tiles)
    use_core_parallel = det_core_parallel and n_split > 1 and n_split == det_splits
    tiles_per_split = pl.cdiv(n_tiles, n_split)
    if use_core_parallel and hasattr(pltpu, "CORE_PARALLEL"):
        dim_sems = (pltpu.CORE_PARALLEL, getattr(pltpu, "ARBITRARY", "arbitrary"))
    else:
        dim_sems = ("parallel", "arbitrary")

    def in_map(i, j):
        tid = i * tiles_per_split + j
        # Clamp so duplicate / overhanging tiles never index past the array;
        # their contribution is zeroed (reduce) or harmlessly re-written (none).
        return (jnp.minimum(tid, n_tiles - 1), 0)

    if reduction in ("mean", "sum"):
        covered = n_split * tiles_per_split * tile_elems
        needs_mask = covered != n_valid
        full_tiles = n_valid // tile_elems        # tiles with no padding at all
        last_row_valid = n_valid - (rows - 1) * LANES

        kernel = functools.partial(
            _qfocal_reduce_kernel, gamma=gamma, alpha=alpha,
            approx_recip=approx_recip, rows=rows,
            last_row_valid=last_row_valid, row_tile=row_tile,
            tiles_per_split=tiles_per_split, full_tiles=full_tiles,
            needs_mask=needs_mask)

        partials = pl.pallas_call(
            kernel,
            out_shape=jax.ShapeDtypeStruct((n_split, SUBLANES, LANES),
                                           jnp.float32),
            grid_spec=pltpu.PrefetchScalarGridSpec(
                num_scalar_prefetch=0,
                grid=(n_split, tiles_per_split),
                in_specs=[
                    pl.BlockSpec((row_tile, LANES), in_map),
                    pl.BlockSpec((row_tile, LANES), in_map),
                ],
                out_specs=pl.BlockSpec((1, SUBLANES, LANES),
                                       lambda i, j: (i, 0, 0)),
            ),
            compiler_params=pltpu.CompilerParams(
                dimension_semantics=dim_sems,
                vmem_limit_bytes=_vmem_limit_bytes(row_tile,
                                                   LANES * in_itemsize)),
            cost_estimate=pl.CostEstimate(
                flops=18 * n_valid, transcendentals=4 * n_valid,
                bytes_accessed=n_valid * in_itemsize
                + n_split * SUBLANES * LANES * 4),
        )(p2, t2)

        total = jnp.sum(partials)                 # tiny (n_split*8*128) reduce
        if reduction == "mean":
            total = total / jnp.float32(n_valid)
        return total

    else:  # 'none' -> elementwise loss with the original shape
        kernel = functools.partial(_qfocal_none_kernel, gamma=gamma,
                                   alpha=alpha, approx_recip=approx_recip)
        out = pl.pallas_call(
            kernel,
            out_shape=jax.ShapeDtypeStruct((slab_rows, LANES), out_dtype),
            grid_spec=pltpu.PrefetchScalarGridSpec(
                num_scalar_prefetch=0,
                grid=(n_split, tiles_per_split),
                in_specs=[
                    pl.BlockSpec((row_tile, LANES), in_map),
                    pl.BlockSpec((row_tile, LANES), in_map),
                ],
                out_specs=pl.BlockSpec((row_tile, LANES), in_map),
            ),
            compiler_params=pltpu.CompilerParams(
                dimension_semantics=dim_sems,
                vmem_limit_bytes=_vmem_limit_bytes(
                    row_tile, LANES * (in_itemsize + out_dtype.itemsize))),
            cost_estimate=pl.CostEstimate(
                flops=18 * n_valid, transcendentals=4 * n_valid,
                bytes_accessed=n_valid * (in_itemsize + out_dtype.itemsize)),
        )(p2, t2)
        if pad == 0:
            return out.reshape(orig_shape)        # free reshape, no slice copy
        return out.reshape(-1)[:n_valid].reshape(orig_shape)


def _reference(pred, true, gamma=1.5, alpha=0.25, reduction="mean"):
    x = pred.astype(jnp.float32)
    t = true.astype(jnp.float32)
    bce = jnp.maximum(x, 0.0) - x * t + jnp.log1p(jnp.exp(-jnp.abs(x)))
    p = jax.nn.sigmoid(x)
    loss = bce * (t * alpha + (1 - t) * (1 - alpha)) * jnp.abs(t - p) ** gamma
    if reduction == "mean":
        return loss.mean()
    if reduction == "sum":
        return loss.sum()
    return loss


if __name__ == "__main__":
    key = jax.random.PRNGKey(0)
    k1, k2, k3, k4 = jax.random.split(key, 4)
    # NCHW, like the PyTorch module's typical detection-head inputs.
    B, C, H, W = 2, 4, 16, 16
    pred = jax.random.normal(k1, (B, C, H, W), dtype=jnp.float32)
    true = jax.random.uniform(k2, (B, C, H, W), dtype=jnp.float32)  # soft targets

    ref_mean = _reference(pred, true, 1.5, 0.25, "mean")
    ref_sum = _reference(pred, true, 1.5, 0.25, "sum")
    ref_none = _reference(pred, true, 1.5, 0.25, "none")

    # Exact path (approx_recip=False): matches the reference tightly.
    out = jax.block_until_ready(
        qfocal_loss(pred, true, reduction="mean", approx_recip=False))
    assert jnp.allclose(out, ref_mean, rtol=1e-5, atol=1e-5), (out, ref_mean)

    out_none = jax.block_until_ready(
        qfocal_loss(pred, true, reduction="none", approx_recip=False))
    assert jnp.allclose(out_none, ref_none, rtol=1e-5, atol=1e-6)

    # Default fast path (EUP approx reciprocal): small, bounded drift allowed.
    out_fast = jax.block_until_ready(qfocal_loss(pred, true, reduction="mean"))
    assert jnp.allclose(out_fast, ref_mean, rtol=5e-3, atol=1e-4), (out_fast, ref_mean)

    out_sum = jax.block_until_ready(qfocal_loss(pred, true, reduction="sum"))
    assert jnp.allclose(out_sum, ref_sum, rtol=5e-3, atol=1e-2), (out_sum, ref_sum)

    out_none_fast = jax.block_until_ready(
        qfocal_loss(pred, true, reduction="none"))
    assert jnp.allclose(out_none_fast, ref_none, rtol=5e-3, atol=1e-3)

    # Lane-unaligned size exercises the padding mask (exact path, tight check).
    pred_u = jax.random.normal(k3, (3, 5, 7), dtype=jnp.float32)
    true_u = jax.random.uniform(k4, (3, 5, 7), dtype=jnp.float32)
    out_u = jax.block_until_ready(
        qfocal_loss(pred_u, true_u, reduction="mean", approx_recip=False))
    ref_u = _reference(pred_u, true_u, 1.5, 0.25, "mean")
    assert jnp.allclose(out_u, ref_u, rtol=1e-5, atol=1e-5), (out_u, ref_u)

    print("KERNEL_OK")
</pallas_src>

<mosaic_0001>
module attributes {stable_mosaic.version = 11 : i64} {
  func.func @_qfocal_reduce_kernel(%arg0: i32, %arg1: i32, %arg2: memref<16x128xf32, #tpu.memory_space<vmem>>, %arg3: memref<16x128xf32, #tpu.memory_space<vmem>>, %arg4: memref<1x8x128xf32, #tpu.memory_space<vmem>>) attributes {dimension_semantics = [#tpu.dimension_semantics<parallel>, #tpu.dimension_semantics<arbitrary>], iteration_bounds = array<i64: 1, 1>, scalar_prefetch = 0 : i64, scratch_operands = 0 : i64, tpu.core_type = #tpu.core_type<tc>, window_params = [{transform_indices = @transform_0, window_bounds = array<i64: 16, 128>}, {transform_indices = @transform_1, window_bounds = array<i64: 16, 128>}, {transform_indices = @transform_2, window_bounds = array<i64: 1, 8, 128>}]} {
    %c0_i32 = arith.constant 0 : i32
    %0 = arith.cmpi eq, %arg1, %c0_i32 : i32
    %1 = arith.extui %0 : i1 to i32
    %c0_i32_0 = arith.constant 0 : i32
    %2 = arith.cmpi ne, %1, %c0_i32_0 : i32
    scf.if %2 {
      %cst_16 = arith.constant 0.000000e+00 : f32
      %41 = vector.broadcast %cst_16 : f32 to vector<1x8x128xf32>
      %c0_17 = arith.constant 0 : index
      %c0_18 = arith.constant 0 : index
      %c0_19 = arith.constant 0 : index
      %42 = vector.load %arg4[%c0_17, %c0_18, %c0_19] : memref<1x8x128xf32, #tpu.memory_space<vmem>>, vector<1x8x128xf32>
      tpu.vector_store %arg4[%c0_17, %c0_18, %c0_19], %41 {strides = array<i32>} : memref<1x8x128xf32, #tpu.memory_space<vmem>>, vector<1x8x128xf32>,
    } else {
    }
    %c0 = arith.constant 0 : index
    %c0_1 = arith.constant 0 : index
    %3 = vector.load %arg2[%c0, %c0_1] : memref<16x128xf32, #tpu.memory_space<vmem>>, vector<16x128xf32>
    %c0_2 = arith.constant 0 : index
    %c0_3 = arith.constant 0 : index
    %4 = vector.load %arg3[%c0_2, %c0_3] : memref<16x128xf32, #tpu.memory_space<vmem>>, vector<16x128xf32>
    %5 = math.absf %3 : vector<16x128xf32>
    %cst = arith.constant 0.000000e+00 : f32
    %6 = vector.broadcast %cst : f32 to vector<16x128xf32>
    %7 = arith.subf %6, %5 : vector<16x128xf32>
    %8 = math.exp %7 : vector<16x128xf32>
    %cst_4 = arith.constant 0.000000e+00 : f32
    %9 = vector.broadcast %cst_4 : f32 to vector<16x128xf32>
    %10 = arith.maximumf %3, %9 : vector<16x128xf32>
    %11 = arith.mulf %3, %4 : vector<16x128xf32>
    %12 = arith.subf %10, %11 : vector<16x128xf32>
    %13 = math.log1p %8 : vector<16x128xf32>
    %14 = arith.addf %12, %13 : vector<16x128xf32>
    %cst_5 = arith.constant 0.000000e+00 : f32
    %15 = vector.broadcast %cst_5 : f32 to vector<16x128xf32>
    %16 = arith.cmpf oge, %3, %15 : vector<16x128xf32>
    %cst_6 = arith.constant 1.000000e+00 : f32
    %17 = vector.broadcast %cst_6 : f32 to vector<16x128xf32>
    %18 = arith.select %16, %17, %8 : vector<16x128xi1>, vector<16x128xf32>
    %cst_7 = arith.constant 1.000000e+00 : f32
    %19 = vector.broadcast %cst_7 : f32 to vector<16x128xf32>
    %20 = arith.addf %19, %8 : vector<16x128xf32>
    %21 = arith.divf %18, %20 : vector<16x128xf32>
    %cst_8 = arith.constant -5.000000e-01 : f32
    %22 = vector.broadcast %cst_8 : f32 to vector<16x128xf32>
    %23 = arith.mulf %4, %22 : vector<16x128xf32>
    %cst_9 = arith.constant 7.500000e-01 : f32
    %24 = vector.broadcast %cst_9 : f32 to vector<16x128xf32>
    %25 = arith.addf %23, %24 : vector<16x128xf32>
    %26 = arith.subf %4, %21 : vector<16x128xf32>
    %27 = math.absf %26 : vector<16x128xf32>
    %28 = math.sqrt %27 : vector<16x128xf32>
    %29 = arith.mulf %27, %28 : vector<16x128xf32>
    %30 = arith.mulf %14, %25 : vector<16x128xf32>
    %31 = arith.mulf %30, %29 : vector<16x128xf32>
    %c0_10 = arith.constant 0 : index
    %c0_11 = arith.constant 0 : index
    %c0_12 = arith.constant 0 : index
    %32 = vector.load %arg4[%c0_10, %c0_11, %c0_12] : memref<1x8x128xf32, #tpu.memory_space<vmem>>, vector<1x8x128xf32>
    %33 = vector.shape_cast %32 : vector<1x8x128xf32> to vector<8x128xf32>
    %34 = vector.extract_strided_slice %31 {offsets = [0, 0], sizes = [8, 128], strides = [1, 1]} : vector<16x128xf32> to vector<8x128xf32>
    %35 = vector.extract_strided_slice %31 {offsets = [8, 0], sizes = [8, 128], strides = [1, 1]} : vector<16x128xf32> to vector<8x128xf32>
    %36 = arith.addf %34, %35 : vector<8x128xf32>
    %37 = arith.addf %33, %36 : vector<8x128xf32>
    %c0_13 = arith.constant 0 : index
    %c0_14 = arith.constant 0 : index
    %c0_15 = arith.constant 0 : index
    %38 = vector.load %arg4[%c0_13, %c0_14, %c0_15] : memref<1x8x128xf32, #tpu.memory_space<vmem>>, vector<1x8x128xf32>
    %39 = vector.shape_cast %38 : vector<1x8x128xf32> to vector<8x128xf32>
    %40 = vector.shape_cast %37 : vector<8x128xf32> to vector<1x8x128xf32>
    tpu.vector_store %arg4[%c0_13, %c0_14, %c0_15], %40 {strides = array<i32>} : memref<1x8x128xf32, #tpu.memory_space<vmem>>, vector<1x8x128xf32>,
    return
  }
  func.func @transform_0(%arg0: i32, %arg1: i32) -> (i32, i32) {
    %c1_i32 = arith.constant 1 : i32
    %0 = arith.muli %arg0, %c1_i32 : i32
    %1 = arith.addi %0, %arg1 : i32
    %c0_i32 = arith.constant 0 : i32
    %2 = arith.minsi %1, %c0_i32 : i32
    %c0_i32_0 = arith.constant 0 : i32
    %c0_i32_1 = arith.constant 0 : i32
    return %2, %c0_i32_0 : i32, i32
  }
  func.func @transform_1(%arg0: i32, %arg1: i32) -> (i32, i32) {
    %c1_i32 = arith.constant 1 : i32
    %0 = arith.muli %arg0, %c1_i32 : i32
    %1 = arith.addi %0, %arg1 : i32
    %c0_i32 = arith.constant 0 : i32
    %2 = arith.minsi %1, %c0_i32 : i32
    %c0_i32_0 = arith.constant 0 : i32
    %c0_i32_1 = arith.constant 0 : i32
    return %2, %c0_i32_0 : i32, i32
  }
  func.func @transform_2(%arg0: i32, %arg1: i32) -> (i32, i32, i32) {
    %c0_i32 = arith.constant 0 : i32
    %c0_i32_0 = arith.constant 0 : i32
    %c0_i32_1 = arith.constant 0 : i32
    return %arg0, %c0_i32, %c0_i32_0 : i32, i32, i32
  }
}

</mosaic_0001>

<llo_original>
// kernel: tpu_custom_call.1
$region0: #{tpu_custom_call.1}
  #allocation0 [shape = 'u32[]', space=smem, size = 0x4, offset = 0x4, fixed_abs, tag = 'smem constant byte address 0x4 - core index']
  #allocation1 [shape = 'u32[144,128]{1,0:T(1,128)}', space=vmem, size = 0x12000, scoped, tag = 'internal scratch']
  %s0 = inlined_call_operand.hbm [shape: f32[16,128], index: 0, kind: input, shape index: {}]
  %s1 = inlined_call_operand.hbm [shape: f32[16,128], index: 1, kind: input, shape index: {}]
  %s2 = inlined_call_operand.hbm [shape: f32[1,8,128], index: 2, kind: output, shape index: {}]
  %s3 = sld [smem:[#allocation0]]
  $region30: #{tpu_custom_call.1} parent=0
    _
  %s5 = ssub.s32 1, %s3
  %s6 = scalar_select 0, %s5, %s3
  $region1: #{tpu_custom_call.1} parent=0
    #allocation2 [shape = 'u8[8192]{0}', space=vmem, size = 0x2000, scoped, tag = 'input window, operand 0, single buffered']
    #allocation3 [shape = 's32[1]{0}', space=sflag, size = 0x4, scoped, tag = 'scoped memory for tpu_custom_call.1']
    #allocation4 [shape = 's32[1]{0}', space=sflag, size = 0x4, scoped, tag = 'scoped memory for tpu_custom_call.1']
    #allocation5 [shape = 'u8[8192]{0}', space=vmem, size = 0x2000, scoped, tag = 'input window, operand 1, single buffered']
    #allocation6 [shape = 's32[1]{0}', space=sflag, size = 0x4, scoped, tag = 'scoped memory for tpu_custom_call.1']
    #allocation7 [shape = 'u8[4096]{0}', space=vmem, size = 0x1000, scoped, tag = 'output window, operand 0, single buffered']
    %7 = vsyncpa [#allocation3], 0
    %8 = vsyncpa [#allocation6], 0
    %9 = vsyncpa [#allocation4], 0
    // Predicated region
    $region2: #{tpu_custom_call.1} parent=1 // pred_check
      _
    $region3: #{tpu_custom_call.1} parent=1 // pred_check_branch
      %11 = sbr.rel (0) target = $region5
    $region4: #{tpu_custom_call.1} parent=1 // pred_region
      %s12 = sadd.s32 0, 0
      %p13 = scmp.lt.s32.totalorder %s12, 0
      %s14 = scalar_select %p13, %s12, 0
      %s15 = smul.u32 2, %s14
      %s17 = ssub.s32 256, 256
      %18 = vsyncadd [#allocation3], %s17
      %s19 = smul.addr %s15, 128
      %s20 = scalar_lea.hbm %s0, %s19
      %s21 = sshll.u32 [#allocation2], 4
      %s22 = int_to_ptr.vmem [resolvable:$true] %s21
      %27 = dma.hbm_to_vmem [thread:$0]  %s20, 256, %s22, [#allocation3], 128, 128, 8
    $region5: #{tpu_custom_call.1} parent=1 // pred_fallthru
      _
    // Predicated region
    $region6: #{tpu_custom_call.1} parent=1 // pred_check
      _
    $region7: #{tpu_custom_call.1} parent=1 // pred_check_branch
      %29 = sbr.rel (0) target = $region9
    $region8: #{tpu_custom_call.1} parent=1 // pred_region
      %s30 = sadd.s32 0, 0
      %p31 = scmp.lt.s32.totalorder %s30, 0
      %s32 = scalar_select %p31, %s30, 0
      %s33 = smul.u32 2, %s32
      %s35 = ssub.s32 256, 256
      %36 = vsyncadd [#allocation6], %s35
      %s37 = smul.addr %s33, 128
      %s38 = scalar_lea.hbm %s1, %s37
      %s39 = sshll.u32 [#allocation5], 4
      %s40 = int_to_ptr.vmem [resolvable:$true] %s39
      %45 = dma.hbm_to_vmem [thread:$0]  %s38, 256, %s40, [#allocation6], 128, 128, 8
    $region9: #{tpu_custom_call.1} parent=1 // pred_fallthru
      _
    // Predicated region
    $region10: #{tpu_custom_call.1} parent=1 // pred_check
      _
    $region11: #{tpu_custom_call.1} parent=1 // pred_check_branch
      %47 = sbr.rel (0) target = $region13
    $region12: #{tpu_custom_call.1} parent=1 // pred_region
      %48 = dma.done [#allocation3], 256
    $region13: #{tpu_custom_call.1} parent=1 // pred_fallthru
      _
    // Predicated region
    $region14: #{tpu_custom_call.1} parent=1 // pred_check
      _
    $region15: #{tpu_custom_call.1} parent=1 // pred_check_branch
      %50 = sbr.rel (0) target = $region17
    $region16: #{tpu_custom_call.1} parent=1 // pred_region
      %51 = dma.done [#allocation6], 256
    $region17: #{tpu_custom_call.1} parent=1 // pred_fallthru
      _
    %s52 = sadd.s32 0, 0
    %p53 = scmp.lt.s32.totalorder %s52, 0
    %s54 = scalar_select %p53, %s52, 0
    %s55 = smul.u32 2, %s54
    %s56 = sadd.s32 0, 0
    %p57 = scmp.lt.s32.totalorder %s56, 0
    %s58 = scalar_select %p57, %s56, 0
    %s59 = smul.u32 2, %s58
    %p60 = scmp.eq.s32.totalorder 0, 0
    // Predicated region
    $region18: #{tpu_custom_call.1} parent=1 // pred_check
      %p61 = pneg %p60
    $region19: #{tpu_custom_call.1} parent=1 // pred_check_branch
      %63 = sbr.rel (%p61) target = $region21
    $region20: #{tpu_custom_call.1} parent=1 // pred_region
      %64 = vst [vmem:[#allocation7] sm:$0xff] 0.0
    $region21: #{tpu_custom_call.1} parent=1 // pred_fallthru
      _
    %v65 = vld [vmem:[#allocation2] sm:$0xff]
    %v66 = vld [vmem:[#allocation2 + $0x8] sm:$0xff]
    %v67 = vld [vmem:[#allocation5] sm:$0xff]
    %v68 = vld [vmem:[#allocation5 + $0x8] sm:$0xff]
    %v69 = vand.u32 2147483647, %v65
    %v70 = vand.u32 2147483647, %v66
    %v71 = vsub.f32 0.0, %v69
    %v72 = vsub.f32 0.0, %v70
    %v73 = vmul.f32 %v71, 1.442695
    %v74 = vpow.pop %v73
    %v75 = vmul.f32 %v72, 1.442695
    %v76 = vpow.pop %v75
    %v77 = vmax.f32 %v65, 0.0
    %v78 = vmax.f32 %v66, 0.0
    %v79 = vmul.f32 %v65, %v67
    %v80 = vmul.f32 %v66, %v68
    %v81 = vsub.f32 %v77, %v79
    %v82 = vsub.f32 %v78, %v80
    %v83 = vadd.f32 %v74, 1.0
    %v84 = vlog2.pop %v83
    %v85 = vmul.f32 %v84, 0.6931472
    %v86 = vmul.f32 -0.5, %v74
    %v87 = vadd.f32 %v86, 1.0
    %v88 = vmul.f32 %v87, %v74
    %v89 = vand.u32 2147483647, %v74
    %vm90 = vcmp.lt.f32.partialorder %v89, 0.0004427343
    %v91 = vsel %vm90, %v88, %v85
    %v92 = vadd.f32 %v76, 1.0
    %v93 = vlog2.pop %v92
    %v94 = vmul.f32 %v93, 0.6931472
    %v95 = vmul.f32 -0.5, %v76
    %v96 = vadd.f32 %v95, 1.0
    %v97 = vmul.f32 %v96, %v76
    %v98 = vand.u32 2147483647, %v76
    %vm99 = vcmp.lt.f32.partialorder %v98, 0.0004427343
    %v100 = vsel %vm99, %v97, %v94
    %v101 = vadd.f32 %v81, %v91
    %v102 = vadd.f32 %v82, %v100
    %vm103 = vcmp.ge.f32.partialorder %v65, 0.0
    %vm104 = vcmp.ge.f32.partialorder %v66, 0.0
    %v105 = vsel %vm103, 1.0, %v74
    %v106 = vsel %vm104, 1.0, %v76
    %v107 = vadd.f32 %v74, 1.0
    %v108 = vadd.f32 %v76, 1.0
    %v109 = vrcp.pop %v107
    %v110 = vmul.f32 %v105, %v109
    %v111 = vrcp.pop %v108
    %v112 = vmul.f32 %v106, %v111
    %v113 = vmul.f32 %v67, -0.5
    %v114 = vmul.f32 %v68, -0.5
    %v115 = vadd.f32 %v113, 0.75
    %v116 = vadd.f32 %v114, 0.75
    %v117 = vsub.f32 %v67, %v110
    %v118 = vsub.f32 %v68, %v112
    %v119 = vand.u32 2147483647, %v117
    %v120 = vand.u32 2147483647, %v118
    %v121 = vrsqrt.pop %v119
    %v122 = vmul.f32 %v119, %v121
    %vm123 = vcmp.eq.f32.partialorder %v119, inf
    %v124 = vsel %vm123, %v119, %v122
    %vm125 = vcmp.eq.f32.partialorder %v119, 0.0
    %v126 = vand.u32 %v119, 2147483648
    %v127 = vsel %vm125, %v126, %v124
    %v128 = vrsqrt.pop %v120
    %v129 = vmul.f32 %v120, %v128
    %vm130 = vcmp.eq.f32.partialorder %v120, inf
    %v131 = vsel %vm130, %v120, %v129
    %vm132 = vcmp.eq.f32.partialorder %v120, 0.0
    %v133 = vand.u32 %v120, 2147483648
    %v134 = vsel %vm132, %v133, %v131
    %v135 = vmul.f32 %v119, %v127
    %v136 = vmul.f32 %v120, %v134
    %v137 = vmul.f32 %v101, %v115
    %v138 = vmul.f32 %v102, %v116
    %v139 = vmul.f32 %v137, %v135
    %v140 = vmul.f32 %v138, %v136
    %v141 = vld [vmem:[#allocation7] sm:$0xff]
    %v142 = vadd.f32 %v139, %v140
    %v143 = vadd.f32 %v141, %v142
    %144 = vst [vmem:[#allocation7] sm:$0xff] %v143
    // Predicated region
    $region22: #{tpu_custom_call.1} parent=1 // pred_check
      _
    $region23: #{tpu_custom_call.1} parent=1 // pred_check_branch
      %146 = sbr.rel (0) target = $region25
    $region24: #{tpu_custom_call.1} parent=1 // pred_region
      %s148 = ssub.s32 128, 128
      %149 = vsyncadd [#allocation4], %s148
      %s151 = sshll.u32 [#allocation7], 4
      %s152 = int_to_ptr.vmem [resolvable:$true] %s151
      %154 = dma.vmem_to_hbm [thread:$0]  %s152, 128, %s2, [#allocation4]
    $region25: #{tpu_custom_call.1} parent=1 // pred_fallthru
      _
    // Predicated region
    $region26: #{tpu_custom_call.1} parent=1 // pred_check
      _
    $region27: #{tpu_custom_call.1} parent=1 // pred_check_branch
      %156 = sbr.rel (0) target = $region29
    $region28: #{tpu_custom_call.1} parent=1 // pred_region
      %157 = dma.done [#allocation4], 128
    $region29: #{tpu_custom_call.1} parent=1 // pred_fallthru
      _
    %158 = vsyncpa [#allocation3], 1
    %159 = vsyncpa [#allocation6], 1
    %160 = vsyncpa [#allocation4], 1

</llo_original>
